<compile_context>
chip_gen: v6e
topology: v6e:2x2x1
jax: 0.10.0
libtpu: 0.0.40
codegen_flags: <defaults>
</compile_context>

<pallas_src>
import math
from typing import NamedTuple

import jax
import jax.numpy as jnp
from jax.experimental import pallas as pl
from jax.experimental.pallas import tpu as pltpu

_MIB = 1024 * 1024


def _round_up(n, m):
    return ((n + m - 1) // m) * m


def _cdiv(a, b):
    return -(-a // b)


def _vmem_limit_bytes():
    """Generation-aware VMEM budget: v5e/v6e have 128 MiB physical, v7x 64 MiB."""
    try:
        cap = int(pltpu.get_tpu_info().vmem_capacity_bytes)
    except Exception:
        cap = 64 * _MIB  # conservative (v7x-sized) fallback
    return int(min(cap - 8 * _MIB, 110 * _MIB))


def _gelu_tanh_f32(x):
    # tanh-approximate GELU: tanh lowers to the EUP (its own VLIW slot), so the
    # activation is nearly free vs. the long erf VALU polynomial.
    # TODO(synk): PyTorch nn.GELU() default is the exact erf GELU; the tanh
    # approximation deviates by <~1e-3 absolute.
    c = 0.7978845608028654  # sqrt(2/pi)
    return 0.5 * x * (1.0 + jnp.tanh(c * (x + 0.044715 * x * x * x)))


def _ffn_kernel_f32(x_ref, w1_ref, b1_ref, w2_ref, b2_ref, o_ref):
    """f32 output path: accumulate directly into the resident output tile."""
    k = pl.program_id(1)

    @pl.when(k == 0)
    def _():
        # Seed the accumulator with b2; it is carried through the reduction.
        o_ref[...] = jnp.broadcast_to(b2_ref[...], o_ref.shape)

    h = jnp.dot(x_ref[...], w1_ref[...], preferred_element_type=jnp.float32)
    h = _gelu_tanh_f32(h + b1_ref[...])
    # TODO(synk): dropout omitted (inference semantics); training-mode dropout
    # would use pltpu.prng_seed + pltpu.prng_random_bits for the mask.
    o_ref[...] += jnp.dot(h, w2_ref[...], preferred_element_type=jnp.float32)


def _ffn_kernel_acc(x_ref, w1_ref, b1_ref, w2_ref, b2_ref, o_ref, acc_ref):
    """bf16 (or other sub-f32) output path: f32 accumulator scratch."""
    k = pl.program_id(1)

    @pl.when(k == 0)
    def _():
        acc_ref[...] = jnp.zeros_like(acc_ref)

    h = jnp.dot(x_ref[...], w1_ref[...], preferred_element_type=jnp.float32)
    h = _gelu_tanh_f32(h + b1_ref[...].astype(jnp.float32))
    # GELU output is downcast to the weight dtype for the MXU-native matmul.
    acc_ref[...] += jnp.dot(h.astype(w2_ref.dtype), w2_ref[...],
                            preferred_element_type=jnp.float32)

    @pl.when(k == pl.num_programs(1) - 1)
    def _():
        o_ref[...] = (acc_ref[...] +
                      b2_ref[...].astype(jnp.float32)).astype(o_ref.dtype)


class FFNParams(NamedTuple):
    w1p: jax.Array
    b1p: jax.Array
    w2p: jax.Array
    b2p: jax.Array
    dim: int
    hidden: int
    dim_p: int
    hidden_p: int
    tk: int


def prepare_ffn_params(w1, b1, w2, b2):
    """Pad the weights once (hoisted out of the per-call path) and pick the
    hidden (reduction) tile tk for this dtype / TPU generation."""
    dim, hidden = w1.shape
    itemsize = w1.dtype.itemsize
    vmem_limit = _vmem_limit_bytes()

    dim_p = _round_up(dim, 128)
    # Fewer, fatter k-steps cut f32 accumulator read-modify-write passes; big
    # VMEM generations (v5e/v6e, ~110 MiB budget) get 1024-wide slabs, the
    # 64 MiB-VMEM v7x stays at 512 (bf16) / 256 (f32).
    if itemsize <= 2:
        tk = 1024 if vmem_limit >= 96 * _MIB else 512
    else:
        tk = 512 if vmem_limit >= 96 * _MIB else 256
    # Both double-buffered weight slabs (W1 + W2) must leave >= half the budget
    # for the activation / output tiles; shrink tk for huge model dims.
    while tk > 128 and 4 * dim_p * tk * itemsize > vmem_limit // 2:
        tk //= 2
    tk = min(tk, _round_up(hidden, 128))
    hidden_p = _round_up(hidden, tk)

    # Zero padding is exact: padded hidden columns give gelu(0)=0 and padded W2
    # rows are zero; padded output columns are zero and sliced off.
    w1p = jnp.pad(w1, ((0, dim_p - dim), (0, hidden_p - hidden)))
    b1p = jnp.pad(b1, (0, hidden_p - hidden)).reshape(1, hidden_p)
    w2p = jnp.pad(w2, ((0, hidden_p - hidden), (0, dim_p - dim)))
    b2p = jnp.pad(b2, (0, dim_p - dim)).reshape(1, dim_p)
    return FFNParams(w1p, b1p, w2p, b2p, dim, hidden, dim_p, hidden_p, tk)


def feed_forward(x, params: FFNParams):
    """x: (B, S, dim) -> (B, S, dim). Dropout is identity (eval semantics)."""
    B, S, dim = x.shape
    assert dim == params.dim
    dtype = x.dtype
    itemsize = dtype.itemsize
    dim_p, hidden_p, tk = params.dim_p, params.hidden_p, params.tk
    M = B * S
    use_acc = dtype != jnp.float32
    vmem_limit = _vmem_limit_bytes()
    budget = int(vmem_limit * 0.85)

    def vmem_need(tm):
        # Double-buffered x / W1 / b1 / W2 / b2 / out tiles (+ f32 acc scratch).
        need = 2 * (tm * dim_p + dim_p * tk + tk + tk * dim_p + dim_p
                    + tm * dim_p) * itemsize
        if use_acc:
            need += tm * dim_p * 4
        return need

    # Token tile: largest candidate that fits the VMEM budget.  W1/W2 are
    # re-streamed from HBM once per row tile, so a bigger tm directly raises
    # arithmetic intensity (~2*tm/itemsize flops/byte) above the HBM roofline.
    tm_candidates = (1024, 512, 256, 128) if itemsize <= 2 else (512, 256, 128)
    tm_eff = min(tm_candidates[-1], _round_up(M, 8))
    for cand in tm_candidates:
        t = min(cand, _round_up(M, 8))
        if vmem_need(t) <= budget:
            tm_eff = t
            break
    M_pad = _round_up(M, tm_eff)
    # Keep >= 2 row tiles when there is enough work (v7x: 2 TCs share axis 0).
    if M_pad // tm_eff == 1 and M > 256:
        tm_eff = _round_up(_cdiv(M, 2), 8)
        M_pad = _round_up(M, tm_eff)

    x2 = jnp.pad(x.reshape(M, dim), ((0, M_pad - M), (0, dim_p - dim)))

    grid = (M_pad // tm_eff, hidden_p // tk)
    row_tiles = grid[0]

    cost = pl.CostEstimate(
        flops=4 * M * dim * params.hidden,            # two matmuls
        transcendentals=M * params.hidden,            # tanh per hidden act
        # Honest traffic: weights stream once per row tile.
        bytes_accessed=(2 * M * dim_p
                        + row_tiles * (2 * dim_p * hidden_p + hidden_p + dim_p)
                        ) * itemsize,
    )

    if use_acc:
        kernel = _ffn_kernel_acc
        scratch = [pltpu.VMEM((tm_eff, dim_p), jnp.float32)]
    else:
        kernel = _ffn_kernel_f32
        scratch = []

    out_p = pl.pallas_call(
        kernel,
        out_shape=jax.ShapeDtypeStruct((M_pad, dim_p), dtype),
        grid_spec=pltpu.PrefetchScalarGridSpec(
            num_scalar_prefetch=0,
            grid=grid,
            in_specs=[
                pl.BlockSpec((tm_eff, dim_p), lambda i, k: (i, 0)),   # x rows
                pl.BlockSpec((dim_p, tk), lambda i, k: (0, k)),       # W1 slab
                pl.BlockSpec((1, tk), lambda i, k: (0, k)),           # b1 slab
                pl.BlockSpec((tk, dim_p), lambda i, k: (k, 0)),       # W2 slab
                pl.BlockSpec((1, dim_p), lambda i, k: (0, 0)),        # b2
            ],
            out_specs=pl.BlockSpec((tm_eff, dim_p), lambda i, k: (i, 0)),
            scratch_shapes=scratch,
        ),
        compiler_params=pltpu.CompilerParams(
            dimension_semantics=("parallel", "arbitrary"),
            vmem_limit_bytes=vmem_limit,
        ),
        cost_estimate=cost,
    )(x2, params.w1p, params.b1p, params.w2p, params.b2p)

    return out_p[:M, :dim].reshape(B, S, dim)


def init_params(key, dim, hidden_dim, dtype=jnp.float32):
    # Deterministic init mimicking nn.Linear's uniform(-1/sqrt(fan_in), ...).
    k1, k2, k3, k4 = jax.random.split(key, 4)
    bound1 = 1.0 / math.sqrt(dim)
    bound2 = 1.0 / math.sqrt(hidden_dim)
    # Stored transposed relative to PyTorch (out,in) so the kernel does x @ W.
    w1 = jax.random.uniform(k1, (dim, hidden_dim), dtype, -bound1, bound1)
    b1 = jax.random.uniform(k2, (hidden_dim,), dtype, -bound1, bound1)
    w2 = jax.random.uniform(k3, (hidden_dim, dim), dtype, -bound2, bound2)
    b2 = jax.random.uniform(k4, (dim,), dtype, -bound2, bound2)
    return w1, b1, w2, b2


if __name__ == "__main__":
    key = jax.random.PRNGKey(0)
    kx, kp, kx2 = jax.random.split(key, 3)

    # Case 1: small "nice" shapes, f32 (no-scratch accumulate-into-output path).
    B, S, dim, hidden_dim = 2, 8, 32, 64
    x = jax.random.normal(kx, (B, S, dim), jnp.float32)
    w1, b1, w2, b2 = init_params(kp, dim, hidden_dim)
    params = prepare_ffn_params(w1, b1, w2, b2)   # weights padded once
    out = feed_forward(x, params)
    jax.block_until_ready(out)
    ref = jax.nn.gelu(x @ w1 + b1, approximate=True) @ w2 + b2
    assert out.shape == (B, S, dim)
    assert jnp.allclose(out, ref, atol=1e-4, rtol=1e-4)

    # Case 2: ragged shapes (exercises wrapper pad + slice path), f32.
    B2, S2, dim2, hidden2 = 1, 5, 48, 96
    x2 = jax.random.normal(kx2, (B2, S2, dim2), jnp.float32)
    p2 = init_params(jax.random.PRNGKey(1), dim2, hidden2)
    params2 = prepare_ffn_params(*p2)
    out2 = feed_forward(x2, params2)
    jax.block_until_ready(out2)
    ref2 = jax.nn.gelu(x2 @ p2[0] + p2[1], approximate=True) @ p2[2] + p2[3]
    assert out2.shape == (B2, S2, dim2)
    assert jnp.allclose(out2, ref2, atol=1e-4, rtol=1e-4)

    # Case 3: bf16 operands (MXU-native path, f32 accumulator scratch).
    xb = x.astype(jnp.bfloat16)
    pb = prepare_ffn_params(*(p.astype(jnp.bfloat16) for p in (w1, b1, w2, b2)))
    outb = feed_forward(xb, pb)
    jax.block_until_ready(outb)
    assert outb.dtype == jnp.bfloat16
    assert jnp.allclose(outb.astype(jnp.float32), ref, atol=1e-1, rtol=1e-1)

    print("KERNEL_OK")
</pallas_src>

<mosaic_0001>
module attributes {stable_mosaic.version = 11 : i64} {
  func.func @_ffn_kernel_f32(%arg0: i32, %arg1: i32, %arg2: memref<16x128xf32, #tpu.memory_space<vmem>>, %arg3: memref<128x128xf32, #tpu.memory_space<vmem>>, %arg4: memref<1x128xf32, #tpu.memory_space<vmem>>, %arg5: memref<128x128xf32, #tpu.memory_space<vmem>>, %arg6: memref<1x128xf32, #tpu.memory_space<vmem>>, %arg7: memref<16x128xf32, #tpu.memory_space<vmem>>) attributes {dimension_semantics = [#tpu.dimension_semantics<parallel>, #tpu.dimension_semantics<arbitrary>], iteration_bounds = array<i64: 1, 1>, scalar_prefetch = 0 : i64, scratch_operands = 0 : i64, tpu.core_type = #tpu.core_type<tc>, window_params = [{transform_indices = @transform_0, window_bounds = array<i64: 16, 128>}, {transform_indices = @transform_1, window_bounds = array<i64: 128, 128>}, {transform_indices = @transform_2, window_bounds = array<i64: 1, 128>}, {transform_indices = @transform_3, window_bounds = array<i64: 128, 128>}, {pipeline_mode = #tpu.pipeline_mode<synchronous>, transform_indices = @transform_4, window_bounds = array<i64: 1, 128>}, {transform_indices = @transform_5, window_bounds = array<i64: 16, 128>}]} {
    %c0_i32 = arith.constant 0 : i32
    %0 = arith.cmpi eq, %arg1, %c0_i32 : i32
    %1 = arith.extui %0 : i1 to i32
    %c0_i32_0 = arith.constant 0 : i32
    %2 = arith.cmpi ne, %1, %c0_i32_0 : i32
    scf.if %2 {
      %c0_17 = arith.constant 0 : index
      %c0_18 = arith.constant 0 : index
      %27 = vector.load %arg6[%c0_17, %c0_18] : memref<1x128xf32, #tpu.memory_space<vmem>>, vector<1x128xf32>
      %28 = vector.shape_cast %27 : vector<1x128xf32> to vector<1x128xf32>
      %29 = vector.broadcast %28 : vector<1x128xf32> to vector<16x128xf32>
      %c0_19 = arith.constant 0 : index
      %c0_20 = arith.constant 0 : index
      %30 = vector.load %arg7[%c0_19, %c0_20] : memref<16x128xf32, #tpu.memory_space<vmem>>, vector<16x128xf32>
      tpu.vector_store %arg7[%c0_19, %c0_20], %29 {strides = array<i32>} : memref<16x128xf32, #tpu.memory_space<vmem>>, vector<16x128xf32>,
    } else {
    }
    %c0 = arith.constant 0 : index
    %c0_1 = arith.constant 0 : index
    %3 = vector.load %arg2[%c0, %c0_1] : memref<16x128xf32, #tpu.memory_space<vmem>>, vector<16x128xf32>
    %c0_2 = arith.constant 0 : index
    %c0_3 = arith.constant 0 : index
    %4 = vector.load %arg3[%c0_2, %c0_3] : memref<128x128xf32, #tpu.memory_space<vmem>>, vector<128x128xf32>
    %cst = arith.constant dense<0.000000e+00> : vector<16x128xf32>
    %5 = tpu.matmul %3, %4, %cst {dimension_numbers = #tpu.dot_dimension_numbers<[1], [0], [0], [1], [0, 0, 1, 1], [], []>} : vector<16x128xf32>, vector<128x128xf32>, vector<16x128xf32> -> vector<16x128xf32>
    %c0_4 = arith.constant 0 : index
    %c0_5 = arith.constant 0 : index
    %6 = vector.load %arg4[%c0_4, %c0_5] : memref<1x128xf32, #tpu.memory_space<vmem>>, vector<1x128xf32>
    %7 = vector.broadcast %6 : vector<1x128xf32> to vector<16x128xf32>
    %8 = arith.addf %5, %7 : vector<16x128xf32>
    %cst_6 = arith.constant 5.000000e-01 : f32
    %9 = vector.broadcast %cst_6 : f32 to vector<16x128xf32>
    %10 = arith.mulf %9, %8 : vector<16x128xf32>
    %cst_7 = arith.constant 4.471500e-02 : f32
    %11 = vector.broadcast %cst_7 : f32 to vector<16x128xf32>
    %12 = arith.mulf %11, %8 : vector<16x128xf32>
    %13 = arith.mulf %12, %8 : vector<16x128xf32>
    %14 = arith.mulf %13, %8 : vector<16x128xf32>
    %15 = arith.addf %8, %14 : vector<16x128xf32>
    %cst_8 = arith.constant 0.797884583 : f32
    %16 = vector.broadcast %cst_8 : f32 to vector<16x128xf32>
    %17 = arith.mulf %16, %15 : vector<16x128xf32>
    %18 = math.tanh %17 : vector<16x128xf32>
    %cst_9 = arith.constant 1.000000e+00 : f32
    %19 = vector.broadcast %cst_9 : f32 to vector<16x128xf32>
    %20 = arith.addf %19, %18 : vector<16x128xf32>
    %21 = arith.mulf %10, %20 : vector<16x128xf32>
    %c0_10 = arith.constant 0 : index
    %c0_11 = arith.constant 0 : index
    %22 = vector.load %arg7[%c0_10, %c0_11] : memref<16x128xf32, #tpu.memory_space<vmem>>, vector<16x128xf32>
    %c0_12 = arith.constant 0 : index
    %c0_13 = arith.constant 0 : index
    %23 = vector.load %arg5[%c0_12, %c0_13] : memref<128x128xf32, #tpu.memory_space<vmem>>, vector<128x128xf32>
    %cst_14 = arith.constant dense<0.000000e+00> : vector<16x128xf32>
    %24 = tpu.matmul %21, %23, %cst_14 {dimension_numbers = #tpu.dot_dimension_numbers<[1], [0], [0], [1], [0, 0, 1, 1], [], []>} : vector<16x128xf32>, vector<128x128xf32>, vector<16x128xf32> -> vector<16x128xf32>
    %25 = arith.addf %22, %24 : vector<16x128xf32>
    %c0_15 = arith.constant 0 : index
    %c0_16 = arith.constant 0 : index
    %26 = vector.load %arg7[%c0_15, %c0_16] : memref<16x128xf32, #tpu.memory_space<vmem>>, vector<16x128xf32>
    tpu.vector_store %arg7[%c0_15, %c0_16], %25 {strides = array<i32>} : memref<16x128xf32, #tpu.memory_space<vmem>>, vector<16x128xf32>,
    return
  }
  func.func @transform_0(%arg0: i32, %arg1: i32) -> (i32, i32) {
    %c0_i32 = arith.constant 0 : i32
    %c0_i32_0 = arith.constant 0 : i32
    return %arg0, %c0_i32 : i32, i32
  }
  func.func @transform_1(%arg0: i32, %arg1: i32) -> (i32, i32) {
    %c0_i32 = arith.constant 0 : i32
    %c0_i32_0 = arith.constant 0 : i32
    return %c0_i32, %arg1 : i32, i32
  }
  func.func @transform_2(%arg0: i32, %arg1: i32) -> (i32, i32) {
    %c0_i32 = arith.constant 0 : i32
    %c0_i32_0 = arith.constant 0 : i32
    return %c0_i32, %arg1 : i32, i32
  }
  func.func @transform_3(%arg0: i32, %arg1: i32) -> (i32, i32) {
    %c0_i32 = arith.constant 0 : i32
    %c0_i32_0 = arith.constant 0 : i32
    return %arg1, %c0_i32 : i32, i32
  }
  func.func @transform_4(%arg0: i32, %arg1: i32) -> (i32, i32) {
    %c0_i32 = arith.constant 0 : i32
    %c0_i32_0 = arith.constant 0 : i32
    %c0_i32_1 = arith.constant 0 : i32
    return %c0_i32, %c0_i32_0 : i32, i32
  }
  func.func @transform_5(%arg0: i32, %arg1: i32) -> (i32, i32) {
    %c0_i32 = arith.constant 0 : i32
    %c0_i32_0 = arith.constant 0 : i32
    return %arg0, %c0_i32 : i32, i32
  }
}

</mosaic_0001>

<llo_original>
// kernel: tpu_custom_call.1
$region0: #{tpu_custom_call.1}
  #allocation0 [shape = 'u32[]', space=smem, size = 0x4, offset = 0x4, fixed_abs, tag = 'smem constant byte address 0x4 - core index']
  #allocation1 [shape = 'u32[144,128]{1,0:T(1,128)}', space=vmem, size = 0x12000, scoped, tag = 'internal scratch']
  %s0 = inlined_call_operand.hbm [shape: f32[16,128], index: 0, kind: input, shape index: {}]
  %s1 = inlined_call_operand.hbm [shape: f32[128,128], index: 1, kind: input, shape index: {}]
  %s2 = inlined_call_operand.vmem [shape: f32[1,128], index: 2, kind: input, shape index: {}]
  %s3 = inlined_call_operand.hbm [shape: f32[128,128], index: 3, kind: input, shape index: {}]
  %s4 = inlined_call_operand.vmem [shape: f32[1,128], index: 4, kind: input, shape index: {}]
  %s5 = inlined_call_operand.hbm [shape: f32[16,128], index: 5, kind: output, shape index: {}]
  %s6 = sld [smem:[#allocation0]]
  $region46: #{tpu_custom_call.1} parent=0
    _
  %s8 = ssub.s32 1, %s6
  %s9 = scalar_select 0, %s8, %s6
  $region1: #{tpu_custom_call.1} parent=0
    #allocation2 [shape = 'u8[8192]{0}', space=vmem, size = 0x2000, scoped, tag = 'input window, operand 0, single buffered']
    #allocation3 [shape = 's32[1]{0}', space=sflag, size = 0x4, scoped, tag = 'scoped memory for tpu_custom_call.1']
    #allocation4 [shape = 's32[1]{0}', space=sflag, size = 0x4, scoped, tag = 'scoped memory for tpu_custom_call.1']
    #allocation5 [shape = 'u8[65536]{0}', space=vmem, size = 0x10000, scoped, tag = 'input window, operand 1, single buffered']
    #allocation6 [shape = 's32[1]{0}', space=sflag, size = 0x4, scoped, tag = 'scoped memory for tpu_custom_call.1']
    #allocation7 [shape = 'u8[65536]{0}', space=vmem, size = 0x10000, scoped, tag = 'input window, operand 3, single buffered']
    #allocation8 [shape = 'u8[8192]{0}', space=vmem, size = 0x2000, scoped, tag = 'output window, operand 0, single buffered']
    %10 = vsyncpa [#allocation3], 0
    %11 = vsyncpa [#allocation6], 0
    %12 = vsyncpa [#allocation4], 0
    // Predicated region
    $region2: #{tpu_custom_call.1} parent=1 // pred_check
      _
    $region3: #{tpu_custom_call.1} parent=1 // pred_check_branch
      %14 = sbr.rel (0) target = $region5
    $region4: #{tpu_custom_call.1} parent=1 // pred_region
      %s16 = ssub.s32 256, 256
      %17 = vsyncadd [#allocation3], %s16
      %s18 = sshll.u32 [#allocation2], 4
      %s19 = int_to_ptr.vmem [resolvable:$true] %s18
      %24 = dma.hbm_to_vmem [thread:$0]  %s0, 256, %s19, [#allocation3], 128, 128, 8
    $region5: #{tpu_custom_call.1} parent=1 // pred_fallthru
      _
    // Predicated region
    $region6: #{tpu_custom_call.1} parent=1 // pred_check
      _
    $region7: #{tpu_custom_call.1} parent=1 // pred_check_branch
      %26 = sbr.rel (0) target = $region9
    $region8: #{tpu_custom_call.1} parent=1 // pred_region
      %s28 = ssub.s32 2048, 2048
      %29 = vsyncadd [#allocation6], %s28
      %s30 = sshll.u32 [#allocation5], 4
      %s31 = int_to_ptr.vmem [resolvable:$true] %s30
      %36 = dma.hbm_to_vmem [thread:$0]  %s1, 2048, %s31, [#allocation6], 128, 128, 8
    $region9: #{tpu_custom_call.1} parent=1 // pred_fallthru
      _
    // Predicated region
    $region10: #{tpu_custom_call.1} parent=1 // pred_check
      _
    $region11: #{tpu_custom_call.1} parent=1 // pred_check_branch
      %38 = sbr.rel (0) target = $region13
    $region12: #{tpu_custom_call.1} parent=1 // pred_region
      _
    $region13: #{tpu_custom_call.1} parent=1 // pred_fallthru
      _
    // Predicated region
    $region14: #{tpu_custom_call.1} parent=1 // pred_check
      _
    $region15: #{tpu_custom_call.1} parent=1 // pred_check_branch
      %40 = sbr.rel (0) target = $region17
    $region16: #{tpu_custom_call.1} parent=1 // pred_region
      %s42 = ssub.s32 2048, 2048
      %43 = vsyncadd [#allocation6], %s42
      %s44 = sshll.u32 [#allocation7], 4
      %s45 = int_to_ptr.vmem [resolvable:$true] %s44
      %50 = dma.hbm_to_vmem [thread:$0]  %s3, 2048, %s45, [#allocation6], 128, 128, 8
    $region17: #{tpu_custom_call.1} parent=1 // pred_fallthru
      _
    // Predicated region
    $region18: #{tpu_custom_call.1} parent=1 // pred_check
      _
    $region19: #{tpu_custom_call.1} parent=1 // pred_check_branch
      %52 = sbr.rel (0) target = $region21
    $region20: #{tpu_custom_call.1} parent=1 // pred_region
      _
    $region21: #{tpu_custom_call.1} parent=1 // pred_fallthru
      _
    // Predicated region
    $region22: #{tpu_custom_call.1} parent=1 // pred_check
      _
    $region23: #{tpu_custom_call.1} parent=1 // pred_check_branch
      %54 = sbr.rel (0) target = $region25
    $region24: #{tpu_custom_call.1} parent=1 // pred_region
      %55 = dma.done [#allocation3], 256
    $region25: #{tpu_custom_call.1} parent=1 // pred_fallthru
      _
    // Predicated region
    $region26: #{tpu_custom_call.1} parent=1 // pred_check
      _
    $region27: #{tpu_custom_call.1} parent=1 // pred_check_branch
      %57 = sbr.rel (0) target = $region29
    $region28: #{tpu_custom_call.1} parent=1 // pred_region
      %58 = dma.done [#allocation6], 2048
    $region29: #{tpu_custom_call.1} parent=1 // pred_fallthru
      _
    // Predicated region
    $region30: #{tpu_custom_call.1} parent=1 // pred_check
      _
    $region31: #{tpu_custom_call.1} parent=1 // pred_check_branch
      %60 = sbr.rel (0) target = $region33
    $region32: #{tpu_custom_call.1} parent=1 // pred_region
      %61 = dma.done [#allocation6], 2048
    $region33: #{tpu_custom_call.1} parent=1 // pred_fallthru
      _
    %p62 = scmp.eq.s32.totalorder 0, 0
    // Predicated region
    $region34: #{tpu_custom_call.1} parent=1 // pred_check
      %p63 = pneg %p62
    $region35: #{tpu_custom_call.1} parent=1 // pred_check_branch
      %65 = sbr.rel (%p63) target = $region37
    $region36: #{tpu_custom_call.1} parent=1 // pred_region
      %v66 = vld [vmem:[%s4] sm:$0x1]
      %v68 = vlaneseq
      %v69 = vshrl.u32 %v68, 7
      %v70 = vsub.s32 0, %v69
      %v71 = vrot.slane %v66, %v70
      %73 = vst [vmem:[#allocation8] sm:$0xff] %v71
      %74 = vst [vmem:[#allocation8 + $0x8] sm:$0xff] %v71
    $region37: #{tpu_custom_call.1} parent=1 // pred_fallthru
      _
    %v75 = vld [vmem:[#allocation2] sm:$0xff]
    %v76 = vld [vmem:[#allocation2 + $0x8] sm:$0xff]
    %v77 = vld [vmem:[#allocation5] sm:$0xff]
    %v78 = vld [vmem:[#allocation5 + $0x8] sm:$0xff]
    %v79 = vld [vmem:[#allocation5 + $0x10] sm:$0xff]
    %v80 = vld [vmem:[#allocation5 + $0x18] sm:$0xff]
    %v81 = vld [vmem:[#allocation5 + $0x20] sm:$0xff]
    %v82 = vld [vmem:[#allocation5 + $0x28] sm:$0xff]
    %v83 = vld [vmem:[#allocation5 + $0x30] sm:$0xff]
    %v84 = vld [vmem:[#allocation5 + $0x38] sm:$0xff]
    %v85 = vld [vmem:[#allocation5 + $0x40] sm:$0xff]
    %v86 = vld [vmem:[#allocation5 + $0x48] sm:$0xff]
    %v87 = vld [vmem:[#allocation5 + $0x50] sm:$0xff]
    %v88 = vld [vmem:[#allocation5 + $0x58] sm:$0xff]
    %v89 = vld [vmem:[#allocation5 + $0x60] sm:$0xff]
    %v90 = vld [vmem:[#allocation5 + $0x68] sm:$0xff]
    %v91 = vld [vmem:[#allocation5 + $0x70] sm:$0xff]
    %v92 = vld [vmem:[#allocation5 + $0x78] sm:$0xff]
    %v93 = vld [vmem:[%s2] sm:$0x1]
    %v95 = vlaneseq
    %v96 = vshrl.u32 %v95, 7
    %v97 = vsub.s32 0, %v96
    %v98 = vrot.slane %v93, %v97
    %100 = vmatprep.subr.mxu0 0.0
    %101 = vmatpush1.msra.mxu0 %v92
    %102 = vmatprep.subr.mxu0 0.0
    %103 = vmatpush1.msra.mxu0 %v91
    %104 = vmatprep.subr.mxu0 0.0
    %105 = vmatpush1.msra.mxu0 %v90
    %106 = vmatprep.subr.mxu0 0.0
    %107 = vmatpush1.msra.mxu0 %v89
    %108 = vmatprep.subr.mxu0 0.0
    %109 = vmatpush1.msra.mxu0 %v88
    %110 = vmatprep.subr.mxu0 0.0
    %111 = vmatpush1.msra.mxu0 %v87
    %112 = vmatprep.subr.mxu0 0.0
    %113 = vmatpush1.msra.mxu0 %v86
    %114 = vmatprep.subr.mxu0 0.0
    %115 = vmatpush1.msra.mxu0 %v85
    %116 = vmatprep.subr.mxu0 0.0
    %117 = vmatpush1.msra.mxu0 %v84
    %118 = vmatprep.subr.mxu0 0.0
    %119 = vmatpush1.msra.mxu0 %v83
    %120 = vmatprep.subr.mxu0 0.0
    %121 = vmatpush1.msra.mxu0 %v82
    %122 = vmatprep.subr.mxu0 0.0
    %123 = vmatpush1.msra.mxu0 %v81
    %124 = vmatprep.subr.mxu0 0.0
    %125 = vmatpush1.msra.mxu0 %v80
    %126 = vmatprep.subr.mxu0 0.0
    %127 = vmatpush1.msra.mxu0 %v79
    %128 = vmatprep.subr.mxu0 0.0
    %129 = vmatpush1.msra.mxu0 %v78
    %130 = vmatprep.subr.mxu0 0.0
    %131 = vmatpush1.msra.mxu0 %v77
    %132 = vmatprep.subr.mxu0 0.0
    %133 = vmatpush2.msra.mxu0 0.0
    %134 = vmatprep.subr.mxu0 0.0
    %135 = vmatpush2.msra.mxu0 0.0
    %136 = vmatprep.subr.mxu0 0.0
    %137 = vmatpush2.msra.mxu0 0.0
    %138 = vmatprep.subr.mxu0 0.0
    %139 = vmatpush2.msra.mxu0 0.0
    %140 = vmatprep.subr.mxu0 0.0
    %141 = vmatpush2.msra.mxu0 0.0
    %142 = vmatprep.subr.mxu0 0.0
    %143 = vmatpush2.msra.mxu0 0.0
    %144 = vmatprep.subr.mxu0 0.0
    %145 = vmatpush2.msra.mxu0 0.0
    %146 = vmatprep.subr.mxu0 0.0
    %147 = vmatpush2.msra.mxu0 0.0
    %148 = vmatprep.subr.mxu0 0.0
    %149 = vmatpush2.msra.mxu0 0.0
    %150 = vmatprep.subr.mxu0 0.0
    %151 = vmatpush2.msra.mxu0 0.0
    %152 = vmatprep.subr.mxu0 0.0
    %153 = vmatpush2.msra.mxu0 0.0
    %154 = vmatprep.subr.mxu0 0.0
    %155 = vmatpush2.msra.mxu0 0.0
    %156 = vmatprep.subr.mxu0 0.0
    %157 = vmatpush2.msra.mxu0 0.0
    %158 = vmatprep.subr.mxu0 0.0
    %159 = vmatpush2.msra.mxu0 0.0
    %160 = vmatprep.subr.mxu0 0.0
    %161 = vmatpush2.msra.mxu0 0.0
    %162 = vmatprep.subr.mxu0 0.0
    %163 = vmatpush2.msra.mxu0 0.0
    %164 = vmatprep.mubr.f32.mxu0 0.0
    %165 = vmatmul.mubr.f32.gmra.mxu0 %v75
    %v166 = vpop.f32.mrf.mxu0
    %v167 = vadd.f32 %v98, %v166
    %v168 = vpop.f32.mrf.mxu0
    %169 = vmatprep.mubr.f32.mxu0 0.0
    %170 = vmatmul.mubr.f32.gmra.mxu0 %v76
    %v171 = vpop.f32.mrf.mxu0
    %v172 = vadd.f32 %v98, %v171
    %v173 = vpop.f32.mrf.mxu0
    %174 = vdwg.mxu0
    %v175 = vmul.f32 %v167, 0.5
    %v176 = vmul.f32 %v172, 0.5
    %v177 = vmul.f32 %v167, 0.044715
    %v178 = vmul.f32 %v172, 0.044715
    %v179 = vmul.f32 %v177, %v167
    %v180 = vmul.f32 %v178, %v172
    %v181 = vmul.f32 %v179, %v167
    %v182 = vmul.f32 %v180, %v172
    %v183 = vadd.f32 %v167, %v181
    %v184 = vadd.f32 %v172, %v182
    %v185 = vmul.f32 %v183, 0.7978846
    %v186 = vmul.f32 %v184, 0.7978846
    %v187 = vtanh.pop %v185
    %v188 = vtanh.pop %v186
    %v189 = vadd.f32 %v187, 1.0
    %v190 = vadd.f32 %v188, 1.0
    %v191 = vmul.f32 %v175, %v189
    %v192 = vmul.f32 %v176, %v190
    %v193 = vld [vmem:[#allocation8] sm:$0xff]
    %v194 = vld [vmem:[#allocation8 + $0x8] sm:$0xff]
    %v195 = vld [vmem:[#allocation7] sm:$0xff]
    %v196 = vld [vmem:[#allocation7 + $0x8] sm:$0xff]
    %v197 = vld [vmem:[#allocation7 + $0x10] sm:$0xff]
    %v198 = vld [vmem:[#allocation7 + $0x18] sm:$0xff]
    %v199 = vld [vmem:[#allocation7 + $0x20] sm:$0xff]
    %v200 = vld [vmem:[#allocation7 + $0x28] sm:$0xff]
    %v201 = vld [vmem:[#allocation7 + $0x30] sm:$0xff]
    %v202 = vld [vmem:[#allocation7 + $0x38] sm:$0xff]
    %v203 = vld [vmem:[#allocation7 + $0x40] sm:$0xff]
    %v204 = vld [vmem:[#allocation7 + $0x48] sm:$0xff]
    %v205 = vld [vmem:[#allocation7 + $0x50] sm:$0xff]
    %v206 = vld [vmem:[#allocation7 + $0x58] sm:$0xff]
    %v207 = vld [vmem:[#allocation7 + $0x60] sm:$0xff]
    %v208 = vld [vmem:[#allocation7 + $0x68] sm:$0xff]
    %v209 = vld [vmem:[#allocation7 + $0x70] sm:$0xff]
    %v210 = vld [vmem:[#allocation7 + $0x78] sm:$0xff]
    %211 = vmatprep.subr.mxu0 0.0
    %212 = vmatpush1.msra.mxu0 %v210
    %213 = vmatprep.subr.mxu0 0.0
    %214 = vmatpush1.msra.mxu0 %v209
    %215 = vmatprep.subr.mxu0 0.0
    %216 = vmatpush1.msra.mxu0 %v208
    %217 = vmatprep.subr.mxu0 0.0
    %218 = vmatpush1.msra.mxu0 %v207
    %219 = vmatprep.subr.mxu0 0.0
    %220 = vmatpush1.msra.mxu0 %v206
    %221 = vmatprep.subr.mxu0 0.0
    %222 = vmatpush1.msra.mxu0 %v205
    %223 = vmatprep.subr.mxu0 0.0
    %224 = vmatpush1.msra.mxu0 %v204
    %225 = vmatprep.subr.mxu0 0.0
    %226 = vmatpush1.msra.mxu0 %v203
    %227 = vmatprep.subr.mxu0 0.0
    %228 = vmatpush1.msra.mxu0 %v202
    %229 = vmatprep.subr.mxu0 0.0
    %230 = vmatpush1.msra.mxu0 %v201
    %231 = vmatprep.subr.mxu0 0.0
    %232 = vmatpush1.msra.mxu0 %v200
    %233 = vmatprep.subr.mxu0 0.0
    %234 = vmatpush1.msra.mxu0 %v199
    %235 = vmatprep.subr.mxu0 0.0
    %236 = vmatpush1.msra.mxu0 %v198
    %237 = vmatprep.subr.mxu0 0.0
    %238 = vmatpush1.msra.mxu0 %v197
    %239 = vmatprep.subr.mxu0 0.0
    %240 = vmatpush1.msra.mxu0 %v196
    %241 = vmatprep.subr.mxu0 0.0
    %242 = vmatpush1.msra.mxu0 %v195
    %243 = vmatprep.subr.mxu0 0.0
    %244 = vmatpush2.msra.mxu0 0.0
    %245 = vmatprep.subr.mxu0 0.0
    %246 = vmatpush2.msra.mxu0 0.0
    %247 = vmatprep.subr.mxu0 0.0
    %248 = vmatpush2.msra.mxu0 0.0
    %249 = vmatprep.subr.mxu0 0.0
    %250 = vmatpush2.msra.mxu0 0.0
    %251 = vmatprep.subr.mxu0 0.0
    %252 = vmatpush2.msra.mxu0 0.0
    %253 = vmatprep.subr.mxu0 0.0
    %254 = vmatpush2.msra.mxu0 0.0
    %255 = vmatprep.subr.mxu0 0.0
    %256 = vmatpush2.msra.mxu0 0.0
    %257 = vmatprep.subr.mxu0 0.0
    %258 = vmatpush2.msra.mxu0 0.0
    %259 = vmatprep.subr.mxu0 0.0
    %260 = vmatpush2.msra.mxu0 0.0
    %261 = vmatprep.subr.mxu0 0.0
    %262 = vmatpush2.msra.mxu0 0.0
    %263 = vmatprep.subr.mxu0 0.0
    %264 = vmatpush2.msra.mxu0 0.0
    %265 = vmatprep.subr.mxu0 0.0
    %266 = vmatpush2.msra.mxu0 0.0
    %267 = vmatprep.subr.mxu0 0.0
    %268 = vmatpush2.msra.mxu0 0.0
    %269 = vmatprep.subr.mxu0 0.0
    %270 = vmatpush2.msra.mxu0 0.0
    %271 = vmatprep.subr.mxu0 0.0
    %272 = vmatpush2.msra.mxu0 0.0
    %273 = vmatprep.subr.mxu0 0.0
    %274 = vmatpush2.msra.mxu0 0.0
    %275 = vmatprep.mubr.f32.mxu0 0.0
    %276 = vmatmul.mubr.f32.gmra.mxu0 %v191
    %v277 = vpop.f32.mrf.mxu0
    %v278 = vadd.f32 0.0, %v277
    %v279 = vpop.f32.mrf.mxu0
    %280 = vmatprep.mubr.f32.mxu0 0.0
    %281 = vmatmul.mubr.f32.gmra.mxu0 %v192
    %v282 = vpop.f32.mrf.mxu0
    %v283 = vadd.f32 0.0, %v282
    %v284 = vpop.f32.mrf.mxu0
    %285 = vdwg.mxu0
    %v286 = vadd.f32 %v193, %v278
    %v287 = vadd.f32 %v194, %v283
    %288 = vst [vmem:[#allocation8] sm:$0xff] %v286
    %289 = vst [vmem:[#allocation8 + $0x8] sm:$0xff] %v287
    // Predicated region
    $region38: #{tpu_custom_call.1} parent=1 // pred_check
      _
    $region39: #{tpu_custom_call.1} parent=1 // pred_check_branch
      %291 = sbr.rel (0) target = $region41
    $region40: #{tpu_custom_call.1} parent=1 // pred_region
      %s293 = ssub.s32 256, 256
      %294 = vsyncadd [#allocation4], %s293
      %s295 = sshll.u32 [#allocation8], 4
      %s296 = int_to_ptr.vmem [resolvable:$true] %s295
      %301 = dma.vmem_to_hbm [thread:$0]  %s296, 256, %s5, [#allocation4], 128, 128, 8
    $region41: #{tpu_custom_call.1} parent=1 // pred_fallthru
      _
    // Predicated region
    $region42: #{tpu_custom_call.1} parent=1 // pred_check
      _
    $region43: #{tpu_custom_call.1} parent=1 // pred_check_branch
      %303 = sbr.rel (0) target = $region45
    $region44: #{tpu_custom_call.1} parent=1 // pred_region
      %304 = dma.done [#allocation4], 256
    $region45: #{tpu_custom_call.1} parent=1 // pred_fallthru
      _
    %305 = vsyncpa [#allocation3], 1
    %306 = vsyncpa [#allocation6], 1
    %307 = vsyncpa [#allocation4], 1

</llo_original>
